<compile_context>
chip_gen: v7x
topology: tpu7x:2x2x1
jax: 0.10.0
libtpu: 0.0.40
codegen_flags: <defaults>
</compile_context>

<pallas_src>
import jax
import jax.numpy as jnp
from jax.experimental import pallas as pl
from jax.experimental.pallas import tpu as pltpu


def _patch_embed_kernel(w_ref, posb_ref, p_ref, o_ref):
    # w_ref:    (tn, K)   conv-weight tile (matmul LHS), resident along batch axis
    # posb_ref: (tn, HW)  pos-embedding + bias tile, f32, resident along batch axis
    # p_ref:    (K, HW)   this batch's patch matrix^T, streamed per grid step
    # o_ref:    (tn, HW)  this batch's output slab (NCHW layout)
    acc = jnp.dot(w_ref[...], p_ref[...], preferred_element_type=jnp.float32)
    # Epilogue in f32 (v5e VPU has no bf16 path); cast only on the final store.
    o_ref[...] = (acc + posb_ref[...]).astype(o_ref.dtype)


def _pick_n_tile(n):
    """Tile of the embed dim: full when small, else a 128/256-aligned divisor."""
    if n <= 256:
        return n
    for cand in (256, 128, 64, 32, 16, 8):
        if n % cand == 0:
            return cand
    return n


def vit_encoder_forward(x, conv_w, conv_b, pos_emb, patch_size,
                        mxu_dtype=jnp.bfloat16, fuse_patch_reorder=False):
    """Forward pass of VisionTransformerEncoder.

    x:        (B, C, H, W)              float32, NCHW (PyTorch convention)
    conv_w:   (num_classes, C, ps, ps)  Conv2d weight
    conv_b:   (num_classes,)            Conv2d bias
    pos_emb:  (1, num_classes, Hp, Wp)  positional embedding
    mxu_dtype: dtype of the matmul operands (default bf16; accumulation is f32).
               Pass jnp.float32 for a bit-accurate f32 path.
    returns:  (B, num_classes, Hp, Wp)
    """
    B, C, H, W = x.shape
    ps = patch_size
    N = conv_w.shape[0]
    Hp, Wp = H // ps, W // ps
    HW = Hp * Wp
    K = C * ps * ps

    # --- glue: transposed patch extraction (reshape/transpose only) -------
    # (B, C, Hp, ps, Wp, ps) -> (B, C, ps, ps, Hp, Wp) -> (B, K, HW);
    # K ordered (c, i, j) to match the Conv2d weight layout below.  The cast to
    # the MXU dtype fuses into this transpose, halving its HBM write traffic.
    p_t = (x.reshape(B, C, Hp, ps, Wp, ps)
             .transpose(0, 1, 3, 5, 2, 4)
             .reshape(B, K, HW)
             .astype(mxu_dtype))

    # Conv2d weight (N, C, ps, ps) -> (N, K); same (c, i, j) K ordering.
    w_t = conv_w.reshape(N, K).astype(mxu_dtype)

    # pos (1, N, Hp, Wp) -> (N, HW), with the conv bias folded in (done once,
    # over only N*HW elements -> effectively free).  Kept f32 for the epilogue.
    posb = pos_emb.reshape(N, HW).astype(jnp.float32) + conv_b.reshape(N, 1)

    tn = _pick_n_tile(N)
    n_tiles = N // tn

    in_elem = jnp.dtype(mxu_dtype).itemsize
    out_elem = jnp.dtype(x.dtype).itemsize

    # --- per-chip VMEM budget ---------------------------------------------
    try:
        vmem_cap = int(pltpu.get_tpu_info().vmem_capacity_bytes)
    except Exception:
        vmem_cap = 64 << 20  # conservative fallback (v7x physical VMEM)
    # Double-buffered streamed P slab / output slab / W tile / pos+bias tile.
    vmem_need = 2 * (K * HW * in_elem
                     + tn * HW * out_elem
                     + tn * K * in_elem
                     + tn * HW * 4)
    vmem_limit = int(min(max(2 * vmem_need + (8 << 20), 16 << 20),
                         (vmem_cap * 3) // 4))

    cost = pl.CostEstimate(
        flops=2 * B * N * K * HW,
        transcendentals=0,
        bytes_accessed=int(N * K * in_elem + N * HW * 4
                           + B * K * HW * in_elem + B * N * HW * out_elem),
    )

    cp_kwargs = dict(
        dimension_semantics=("parallel", "parallel"),  # N-tiles x batch slabs
        vmem_limit_bytes=vmem_limit,
    )
    if fuse_patch_reorder:
        # Allow XLA to fuse the patch reshape/transpose producer into the
        # Pallas input (avoids the pre-kernel HBM round trip).
        cp_kwargs["allow_input_fusion"] = [False, False, True]

    # --- Pallas kernel: per-(N-tile, batch) (tn, HW) matmul slab + pos add ---
    out_flat = pl.pallas_call(
        _patch_embed_kernel,
        out_shape=jax.ShapeDtypeStruct((B, N, HW), x.dtype),
        grid_spec=pltpu.PrefetchScalarGridSpec(
            num_scalar_prefetch=0,
            grid=(n_tiles, B),
            in_specs=[
                pl.BlockSpec((tn, K), lambda j, b: (j, 0)),            # W tile
                pl.BlockSpec((tn, HW), lambda j, b: (j, 0)),           # pos+bias tile
                pl.BlockSpec((None, K, HW), lambda j, b: (b, 0, 0)),   # P_b^T streamed
            ],
            out_specs=pl.BlockSpec((None, tn, HW), lambda j, b: (b, j, 0)),
        ),
        compiler_params=pltpu.CompilerParams(**cp_kwargs),
        cost_estimate=cost,
    )(w_t, posb, p_t)

    # (B, N, HW) is already NCHW-ordered -> reshape only, no transpose.
    return out_flat.reshape(B, N, Hp, Wp)


def _reference_forward(x, conv_w, conv_b, pos_emb, patch_size):
    """Pure-JAX reference (conv stride=kernel=patch + bias + pos add), f32."""
    y = jax.lax.conv_general_dilated(
        x, conv_w,
        window_strides=(patch_size, patch_size),
        padding="VALID",
        dimension_numbers=("NCHW", "OIHW", "NCHW"),
    )
    y = y + conv_b.reshape(1, -1, 1, 1)
    return y + pos_emb


if __name__ == "__main__":
    # Small shapes consistent with the module's forward.
    image_size = 16
    patch_size = 4
    in_channels = 4
    num_classes = 32
    batch = 2

    key = jax.random.PRNGKey(0)
    k_x, k_w, k_b, k_pos = jax.random.split(key, 4)

    x = jax.random.normal(k_x, (batch, in_channels, image_size, image_size),
                          dtype=jnp.float32)
    conv_w = 0.05 * jax.random.normal(
        k_w, (num_classes, in_channels, patch_size, patch_size), dtype=jnp.float32)
    conv_b = 0.01 * jax.random.normal(k_b, (num_classes,), dtype=jnp.float32)
    pos_emb = jax.random.normal(
        k_pos,
        (1, num_classes, image_size // patch_size, image_size // patch_size),
        dtype=jnp.float32)

    expected_shape = (batch, num_classes,
                      image_size // patch_size, image_size // patch_size)

    ref = jax.block_until_ready(
        _reference_forward(x, conv_w, conv_b, pos_emb, patch_size))

    # 1) f32-operand path: bit-tight check against the f32 reference.
    out_f32 = jax.block_until_ready(
        vit_encoder_forward(x, conv_w, conv_b, pos_emb, patch_size,
                            mxu_dtype=jnp.float32))
    assert out_f32.shape == expected_shape
    assert jnp.allclose(out_f32, ref, atol=1e-4, rtol=1e-4), "f32 mismatch vs reference"

    # 2) Default bf16-operand path (f32 accumulation): loose tolerance — the
    #    difference is the expected bf16 operand rounding, not a kernel bug.
    out_bf16 = jax.block_until_ready(
        vit_encoder_forward(x, conv_w, conv_b, pos_emb, patch_size))
    assert out_bf16.shape == expected_shape
    assert jnp.allclose(out_bf16, ref, atol=5e-2, rtol=0.0), "bf16 mismatch vs reference"

    print("KERNEL_OK")
</pallas_src>

<mosaic_0001>
module attributes {stable_mosaic.version = 11 : i64} {
  func.func @_patch_embed_kernel(%arg0: i32, %arg1: i32, %arg2: memref<32x64xf32, #tpu.memory_space<vmem>>, %arg3: memref<32x16xf32, #tpu.memory_space<vmem>>, %arg4: memref<1x64x16xf32, #tpu.memory_space<vmem>>, %arg5: memref<1x32x16xf32, #tpu.memory_space<vmem>>) attributes {dimension_semantics = [#tpu.dimension_semantics<parallel>, #tpu.dimension_semantics<parallel>], iteration_bounds = array<i64: 1, 2>, scalar_prefetch = 0 : i64, scratch_operands = 0 : i64, tpu.core_type = #tpu.core_type<tc>, window_params = [{transform_indices = @transform_0, window_bounds = array<i64: 32, 64>}, {transform_indices = @transform_1, window_bounds = array<i64: 32, 16>}, {transform_indices = @transform_2, window_bounds = array<i64: 1, 64, 16>}, {transform_indices = @transform_3, window_bounds = array<i64: 1, 32, 16>}]} {
    %c0 = arith.constant 0 : index
    %c0_0 = arith.constant 0 : index
    %0 = vector.load %arg2[%c0, %c0_0] : memref<32x64xf32, #tpu.memory_space<vmem>>, vector<32x64xf32>
    %c0_1 = arith.constant 0 : index
    %c0_2 = arith.constant 0 : index
    %c0_3 = arith.constant 0 : index
    %1 = vector.load %arg4[%c0_1, %c0_2, %c0_3] : memref<1x64x16xf32, #tpu.memory_space<vmem>>, vector<1x64x16xf32>
    %2 = vector.shape_cast %1 : vector<1x64x16xf32> to vector<64x16xf32>
    %cst = arith.constant dense<0.000000e+00> : vector<32x16xf32>
    %3 = tpu.matmul %0, %2, %cst {dimension_numbers = #tpu.dot_dimension_numbers<[1], [0], [0], [1], [0, 0, 1, 1], [], []>} : vector<32x64xf32>, vector<64x16xf32>, vector<32x16xf32> -> vector<32x16xf32>
    %c0_4 = arith.constant 0 : index
    %c0_5 = arith.constant 0 : index
    %4 = vector.load %arg3[%c0_4, %c0_5] : memref<32x16xf32, #tpu.memory_space<vmem>>, vector<32x16xf32>
    %5 = arith.addf %3, %4 : vector<32x16xf32>
    %c0_6 = arith.constant 0 : index
    %c0_7 = arith.constant 0 : index
    %c0_8 = arith.constant 0 : index
    %6 = vector.load %arg5[%c0_6, %c0_7, %c0_8] : memref<1x32x16xf32, #tpu.memory_space<vmem>>, vector<1x32x16xf32>
    %7 = vector.shape_cast %6 : vector<1x32x16xf32> to vector<32x16xf32>
    %8 = vector.shape_cast %5 : vector<32x16xf32> to vector<1x32x16xf32>
    tpu.vector_store %arg5[%c0_6, %c0_7, %c0_8], %8 {strides = array<i32>} : memref<1x32x16xf32, #tpu.memory_space<vmem>>, vector<1x32x16xf32>,
    return
  }
  func.func @transform_0(%arg0: i32, %arg1: i32) -> (i32, i32) {
    %c0_i32 = arith.constant 0 : i32
    %c0_i32_0 = arith.constant 0 : i32
    return %arg0, %c0_i32 : i32, i32
  }
  func.func @transform_1(%arg0: i32, %arg1: i32) -> (i32, i32) {
    %c0_i32 = arith.constant 0 : i32
    %c0_i32_0 = arith.constant 0 : i32
    return %arg0, %c0_i32 : i32, i32
  }
  func.func @transform_2(%arg0: i32, %arg1: i32) -> (i32, i32, i32) {
    %c0_i32 = arith.constant 0 : i32
    %c0_i32_0 = arith.constant 0 : i32
    %c0_i32_1 = arith.constant 0 : i32
    return %arg1, %c0_i32, %c0_i32_0 : i32, i32, i32
  }
  func.func @transform_3(%arg0: i32, %arg1: i32) -> (i32, i32, i32) {
    %c0_i32 = arith.constant 0 : i32
    %c0_i32_0 = arith.constant 0 : i32
    return %arg1, %arg0, %c0_i32 : i32, i32, i32
  }
}

</mosaic_0001>

<llo_original>
// kernel: tpu_custom_call.1
$region0: #{tpu_custom_call.1}
  #allocation0 [shape = 'u32[]', space=smem, size = 0x4, offset = 0x4, fixed_abs, tag = 'smem constant byte address 0x4 - core index']
  #allocation1 [shape = 'u32[144,128]{1,0:T(1,128)}', space=vmem, size = 0x12000, scoped, tag = 'internal scratch']
  %s0 = inlined_call_operand.vmem [shape: f32[32,64], index: 0, kind: input, shape index: {}]
  %s1 = inlined_call_operand.vmem [shape: f32[32,16], index: 1, kind: input, shape index: {}]
  %s2 = inlined_call_operand.vmem [shape: f32[2,64,16], index: 2, kind: input, shape index: {}]
  %s3 = inlined_call_operand.vmem [shape: f32[2,32,16], index: 3, kind: output, shape index: {}]
  %s4 = sld [smem:[#allocation0]]
  $region45: #{tpu_custom_call.1} parent=0
    _
  %s6 = ssub.s32 1, %s4
  %s7 = scalar_select 0, %s6, %s4
  loop: start=0, step=1, limit=4
  $region2: #{tpu_custom_call.1} parent=0 // loop_pre_header
    _
  $region3: #{tpu_custom_call.1} parent=0 // loop_header
    %s9 = sphi 0, %s13
    %p10 = scmp.ge.s32.totalorder %s9, 4
    %s16 = sphi 0, %s28
    %s17 = sphi 0, %s24
    %s18 = sphi 0, %s16
    %s19 = sphi 0, %s17
    %s20 = sphi 0, %s18
    %s21 = sphi 0, %s19
    %s31 = sphi 0, %s33
    %s34 = sphi 0, %s31
    %s35 = sphi 0, %s34
    %s51 = sphi 0, %s35
    %s57 = sphi 0, %s59
    %s60 = sphi 0, %s57
    %s61 = sphi 0, %s60
    %s77 = sphi 0, %s61
    %s83 = sphi 0, %s85
    %s86 = sphi 0, %s83
    %s87 = sphi 0, %s86
    %s103 = sphi 0, %s87
    %s111 = sphi 0, %s113
    %s114 = sphi 0, %s111
    %s115 = sphi 0, %s114
    %s131 = sphi 0, %s115
  $region4: #{tpu_custom_call.1} parent=0 // loop_header_branch
    %12 = sbr.rel (%p10) target = $region8
  $region5: #{tpu_custom_call.1} parent=0 // loop_body
    %s14 = ssub.s32 %s9, 1
    %s15 = ssub.s32 %s9, 2
    %s22 = sadd.s32 1, %s17
    %p23 = scmp.ge.s32.totalorder %s22, 2
    %s24 = scalar_select %p23, 0, %s22
    %s25 = sadd.s32 1, %s16
    %s26 = scalar_select %p23, %s25, %s16
    %p27 = scmp.ge.s32.totalorder %s26, 1
    %s28 = scalar_select %p27, 0, %s26
    %s29 = ssub.s32 %s16, %s28
    %p30 = scmp.eq.s32.totalorder %s29, 0
    %s32 = sadd.s32 %s31, 1
    %s33 = scalar_select %p30, %s31, %s32
    %p36 = pneg %p30
    %p37 = scmp.eq.s32.totalorder %s9, 1
    %p38 = por %p36, %p37
    %p39 = scmp.ne.s32.totalorder %s31, %s34
    %p40 = scmp.eq.s32.totalorder %s9, 0
    %p41 = por %p39, %p40
    %p42 = scmp.ne.s32.totalorder %s31, %s34
    %p43 = scmp.eq.s32.totalorder %s14, 1
    %p44 = por %p42, %p43
    %p45 = scmp.ne.s32.totalorder %s34, %s35
    %p46 = scmp.eq.s32.totalorder %s14, 0
    %p47 = por %p45, %p46
    %p48 = scmp.ne.s32.totalorder %s34, %s35
    %p49 = scmp.eq.s32.totalorder %s15, 1
    %p50 = por %p48, %p49
    %p52 = scmp.ne.s32.totalorder %s35, %s51
    %p53 = scmp.eq.s32.totalorder %s15, 0
    %p54 = por %p52, %p53
    %s55 = ssub.s32 %s16, %s28
    %p56 = scmp.eq.s32.totalorder %s55, 0
    %s58 = sadd.s32 %s57, 1
    %s59 = scalar_select %p56, %s57, %s58
    %p62 = pneg %p56
    %p63 = scmp.eq.s32.totalorder %s9, 1
    %p64 = por %p62, %p63
    %p65 = scmp.ne.s32.totalorder %s57, %s60
    %p66 = scmp.eq.s32.totalorder %s9, 0
    %p67 = por %p65, %p66
    %p68 = scmp.ne.s32.totalorder %s57, %s60
    %p69 = scmp.eq.s32.totalorder %s14, 1
    %p70 = por %p68, %p69
    %p71 = scmp.ne.s32.totalorder %s60, %s61
    %p72 = scmp.eq.s32.totalorder %s14, 0
    %p73 = por %p71, %p72
    %p74 = scmp.ne.s32.totalorder %s60, %s61
    %p75 = scmp.eq.s32.totalorder %s15, 1
    %p76 = por %p74, %p75
    %p78 = scmp.ne.s32.totalorder %s61, %s77
    %p79 = scmp.eq.s32.totalorder %s15, 0
    %p80 = por %p78, %p79
    %s81 = ssub.s32 %s17, %s24
    %p82 = scmp.eq.s32.totalorder %s81, 0
    %s84 = sadd.s32 %s83, 1
    %s85 = scalar_select %p82, %s83, %s84
    %p88 = pneg %p82
    %p89 = scmp.eq.s32.totalorder %s9, 1
    %p90 = por %p88, %p89
    %p91 = scmp.ne.s32.totalorder %s83, %s86
    %p92 = scmp.eq.s32.totalorder %s9, 0
    %p93 = por %p91, %p92
    %p94 = scmp.ne.s32.totalorder %s83, %s86
    %p95 = scmp.eq.s32.totalorder %s14, 1
    %p96 = por %p94, %p95
    %p97 = scmp.ne.s32.totalorder %s86, %s87
    %p98 = scmp.eq.s32.totalorder %s14, 0
    %p99 = por %p97, %p98
    %p100 = scmp.ne.s32.totalorder %s86, %s87
    %p101 = scmp.eq.s32.totalorder %s15, 1
    %p102 = por %p100, %p101
    %p104 = scmp.ne.s32.totalorder %s87, %s103
    %p105 = scmp.eq.s32.totalorder %s15, 0
    %p106 = por %p104, %p105
    %s107 = ssub.s32 %s17, %s24
    %s108 = ssub.s32 %s16, %s28
    %s109 = sor.u32 %s107, %s108
    %p110 = scmp.eq.s32.totalorder %s109, 0
    %s112 = sadd.s32 %s111, 1
    %s113 = scalar_select %p110, %s111, %s112
    %p116 = pneg %p110
    %p117 = scmp.eq.s32.totalorder %s9, 1
    %p118 = por %p116, %p117
    %p119 = scmp.ne.s32.totalorder %s111, %s114
    %p120 = scmp.eq.s32.totalorder %s9, 0
    %p121 = por %p119, %p120
    %p122 = scmp.ne.s32.totalorder %s111, %s114
    %p123 = scmp.eq.s32.totalorder %s14, 1
    %p124 = por %p122, %p123
    %p125 = scmp.ne.s32.totalorder %s114, %s115
    %p126 = scmp.eq.s32.totalorder %s14, 0
    %p127 = por %p125, %p126
    %p128 = scmp.ne.s32.totalorder %s114, %s115
    %p129 = scmp.eq.s32.totalorder %s15, 1
    %p130 = por %p128, %p129
    %p132 = scmp.ne.s32.totalorder %s115, %s131
    %p133 = scmp.eq.s32.totalorder %s15, 0
    %p134 = por %p132, %p133
    %p135 = scmp.le.s32.totalorder 1, %s9
    %p136 = scmp.lt.s32.totalorder %s9, 3
    %p137 = pnand %p135, %p136
    %p138 = pneg %p137
    // Predicated region
    $region9: #{tpu_custom_call.1} parent=5 // pred_check
      _
    $region10: #{tpu_custom_call.1} parent=5 // pred_check_branch
      %140 = sbr.rel (%p137) target = $region12
    $region11: #{tpu_custom_call.1} parent=5 // pred_region
      %s141 = ssub.s32 %s9, 1
      // Predicated region
      $region13: #{tpu_custom_call.1} parent=11 // pred_check
        %p142 = pneg %p47
      $region14: #{tpu_custom_call.1} parent=11 // pred_check_branch
        %144 = sbr.rel (%p142) target = $region16
      $region15: #{tpu_custom_call.1} parent=11 // pred_region
        %s145 = smul.u32 4, %s18
        %p146 = scmp.lt.s32.totalorder %s145, 3
        %s147 = scalar_select %p146, %s145, 3
        %s148 = smul.addr %s147, 8
        %s149 = scalar_lea.vmem %s0, %s148
        %s150 = smul.u32 4, %s18
      $region16: #{tpu_custom_call.1} parent=11 // pred_fallthru
        _
      // Predicated region
      $region17: #{tpu_custom_call.1} parent=11 // pred_check
        %p151 = pneg %p73
      $region18: #{tpu_custom_call.1} parent=11 // pred_check_branch
        %153 = sbr.rel (%p151) target = $region20
      $region19: #{tpu_custom_call.1} parent=11 // pred_region
        %s154 = smul.u32 4, %s18
        %p155 = scmp.lt.s32.totalorder %s154, 3
        %s156 = scalar_select %p155, %s154, 3
        %s157 = smul.addr %s156, 8
        %s158 = scalar_lea.vmem %s1, %s157
        %s159 = smul.u32 4, %s18
      $region20: #{tpu_custom_call.1} parent=11 // pred_fallthru
        _
    $region12: #{tpu_custom_call.1} parent=5 // pred_fallthru
      _
    %p160 = scmp.lt.s32.totalorder %s9, 2
    // Predicated region
    $region21: #{tpu_custom_call.1} parent=5 // pred_check
      %p161 = pneg %p160
    $region22: #{tpu_custom_call.1} parent=5 // pred_check_branch
      %163 = sbr.rel (%p161) target = $region24
    $region23: #{tpu_custom_call.1} parent=5 // pred_region
      // Predicated region
      $region25: #{tpu_custom_call.1} parent=23 // pred_check
        %p164 = pneg %p93
      $region26: #{tpu_custom_call.1} parent=23 // pred_check_branch
        %166 = sbr.rel (%p164) target = $region28
      $region27: #{tpu_custom_call.1} parent=23 // pred_region
        %p167 = scmp.lt.s32.totalorder %s17, 1
        %s168 = scalar_select %p167, %s17, 1
        %s169 = smul.addr %s168, 8
        %s170 = smul.addr %s169, 8
        %s171 = scalar_lea.vmem %s2, %s170
      $region28: #{tpu_custom_call.1} parent=23 // pred_fallthru
        _
    $region24: #{tpu_custom_call.1} parent=5 // pred_fallthru
      _
    %p172 = scmp.le.s32.totalorder 1, %s9
    %p173 = scmp.lt.s32.totalorder %s9, 3
    %p174 = pnand %p172, %p173
    %p175 = pneg %p174
    // Predicated region
    $region29: #{tpu_custom_call.1} parent=5 // pred_check
      _
    $region30: #{tpu_custom_call.1} parent=5 // pred_check_branch
      %177 = sbr.rel (%p174) target = $region32
    $region31: #{tpu_custom_call.1} parent=5 // pred_region
      %s178 = ssub.s32 %s9, 1
      %s179 = smul.u32 4, %s18
      %p180 = scmp.lt.s32.totalorder %s179, 3
      %s181 = scalar_select %p180, %s179, 3
      %s182 = smul.addr %s181, 8
      %s183 = scalar_lea.vmem %s0, %s182
      %p184 = pneg %p47
      %p185 = pneg %p44
      %s186 = smul.u32 4, %s18
      %p187 = scmp.lt.s32.totalorder %s186, 3
      %s188 = scalar_select %p187, %s186, 3
      %s189 = smul.addr %s188, 8
      %s190 = scalar_lea.vmem %s1, %s189
      %p191 = pneg %p73
      %p192 = pneg %p70
      %p193 = scmp.lt.s32.totalorder %s19, 1
      %s194 = scalar_select %p193, %s19, 1
      %s195 = smul.addr %s194, 8
      %s196 = smul.addr %s195, 8
      %s197 = scalar_lea.vmem %s2, %s196
      %p198 = pneg %p99
      %p199 = pneg %p96
      %p200 = pneg %p127
      %p201 = pneg %p124
      %s202 = smul.u32 4, %s18
      %p203 = scmp.lt.s32.totalorder %s19, 1
      %s204 = scalar_select %p203, %s19, 1
      %p205 = scmp.lt.s32.totalorder %s202, 3
      %s206 = scalar_select %p205, %s202, 3
      %s207 = smul.addr %s204, 4
      %s208 = sadd.s32 %s206, %s207
      %s209 = smul.addr %s208, 8
      %s210 = scalar_lea.vmem %s3, %s209
      %s211 = smul.u32 4, %s18
      %p212 = scmp.lt.s32.totalorder %s211, 3
      %s213 = scalar_select %p212, %s211, 3
      %s214 = smul.addr %s213, 8
      %s215 = scalar_lea.vmem %s0, %s214
      %s216 = smul.u32 4, %s18
      %s217 = smul.u32 4, %s18
      %p218 = scmp.lt.s32.totalorder %s217, 3
      %s219 = scalar_select %p218, %s217, 3
      %s220 = smul.addr %s219, 8
      %s221 = scalar_lea.vmem %s1, %s220
      %s222 = smul.u32 4, %s18
      %p223 = scmp.lt.s32.totalorder %s19, 1
      %s224 = scalar_select %p223, %s19, 1
      %s225 = smul.addr %s224, 8
      %s226 = smul.addr %s225, 8
      %s227 = scalar_lea.vmem %s2, %s226
      %s228 = smul.u32 4, %s18
      %p229 = scmp.lt.s32.totalorder %s19, 1
      %s230 = scalar_select %p229, %s19, 1
      %p231 = scmp.lt.s32.totalorder %s228, 3
      %s232 = scalar_select %p231, %s228, 3
      %s233 = smul.addr %s230, 4
      %s234 = sadd.s32 %s232, %s233
      %s235 = smul.addr %s234, 8
      %s236 = scalar_lea.vmem %s3, %s235
      %s237 = smul.u32 4, %s18
      %v238 = vld [vmem:[%s215] sm:$0xff]
      %v239 = vld [vmem:[%s215 + $0x8] sm:$0xff]
      %v240 = vld [vmem:[%s215 + $0x10] sm:$0xff]
      %v241 = vld [vmem:[%s215 + $0x18] sm:$0xff]
      %v242 = vld [vmem:[%s227] sm:$0xff]
      %v243 = vld [vmem:[%s227 + $0x8] sm:$0xff]
      %v244 = vld [vmem:[%s227 + $0x10] sm:$0xff]
      %v245 = vld [vmem:[%s227 + $0x18] sm:$0xff]
      %v246 = vld [vmem:[%s227 + $0x20] sm:$0xff]
      %v247 = vld [vmem:[%s227 + $0x28] sm:$0xff]
      %v248 = vld [vmem:[%s227 + $0x30] sm:$0xff]
      %v249 = vld [vmem:[%s227 + $0x38] sm:$0xff]
      %v250 = vld [vmem:[%s221] sm:$0xff]
      %v251 = vld [vmem:[%s221 + $0x8] sm:$0xff]
      %v252 = vld [vmem:[%s221 + $0x10] sm:$0xff]
      %v253 = vld [vmem:[%s221 + $0x18] sm:$0xff]
      %vm254 = vcmask 523264
      %v256 = vsel %vm254, %v238, 0
      %v259 = vsel %vm254, %v239, 0
      %v262 = vsel %vm254, %v240, 0
      %v265 = vsel %vm254, %v241, 0
      %267 = vmatprep.subr.mxu0 0.0
      %268 = vmatpush1.msra.mxu0 %v242
      %269 = vmatprep.subr.mxu0 0.0
      %270 = vmatpush1.msra.mxu0 %v243
      %271 = vmatprep.subr.mxu0 0.0
      %272 = vmatpush1.msra.mxu0 %v244
      %273 = vmatprep.subr.mxu0 0.0
      %274 = vmatpush1.msra.mxu0 %v245
      %275 = vmatprep.subr.mxu0 0.0
      %276 = vmatpush1.msra.mxu0 %v246
      %277 = vmatprep.subr.mxu0 0.0
      %278 = vmatpush1.msra.mxu0 %v247
      %279 = vmatprep.subr.mxu0 0.0
      %280 = vmatpush1.msra.mxu0 %v248
      %281 = vmatprep.subr.mxu0 0.0
      %282 = vmatpush1.msra.mxu0 %v249
      %283 = vmatprep.subr.mxu0 0.0
      %284 = vmatpush1.msra.mxu0 0.0
      %285 = vmatprep.subr.mxu0 0.0
      %286 = vmatpush1.msra.mxu0 0.0
      %287 = vmatprep.subr.mxu0 0.0
      %288 = vmatpush1.msra.mxu0 0.0
      %289 = vmatprep.subr.mxu0 0.0
      %290 = vmatpush1.msra.mxu0 0.0
      %291 = vmatprep.subr.mxu0 0.0
      %292 = vmatpush1.msra.mxu0 0.0
      %293 = vmatprep.subr.mxu0 0.0
      %294 = vmatpush1.msra.mxu0 0.0
      %295 = vmatprep.subr.mxu0 0.0
      %296 = vmatpush1.msra.mxu0 0.0
      %297 = vmatprep.subr.mxu0 0.0
      %298 = vmatpush1.msra.mxu0 0.0
      %299 = vmatprep.subr.mxu0 0.0
      %300 = vmatpush1.msra.mxu0 0.0
      %301 = vmatprep.subr.mxu0 0.0
      %302 = vmatpush1.msra.mxu0 0.0
      %303 = vmatprep.subr.mxu0 0.0
      %304 = vmatpush1.msra.mxu0 0.0
      %305 = vmatprep.subr.mxu0 0.0
      %306 = vmatpush1.msra.mxu0 0.0
      %307 = vmatprep.subr.mxu0 0.0
      %308 = vmatpush1.msra.mxu0 0.0
      %309 = vmatprep.subr.mxu0 0.0
      %310 = vmatpush1.msra.mxu0 0.0
      %311 = vmatprep.subr.mxu0 0.0
      %312 = vmatpush1.msra.mxu0 0.0
      %313 = vmatprep.subr.mxu0 0.0
      %314 = vmatpush1.msra.mxu0 0.0
      %315 = vmatprep.subr.mxu0 0.0
      %316 = vmatpush1.msra.mxu0 0.0
      %317 = vmatprep.subr.mxu0 0.0
      %318 = vmatpush1.msra.mxu0 0.0
      %319 = vmatprep.subr.mxu0 0.0
      %320 = vmatpush1.msra.mxu0 0.0
      %321 = vmatprep.subr.mxu0 0.0
      %322 = vmatpush1.msra.mxu0 0.0
      %323 = vmatprep.subr.mxu0 0.0
      %324 = vmatpush1.msra.mxu0 0.0
      %325 = vmatprep.subr.mxu0 0.0
      %326 = vmatpush1.msra.mxu0 0.0
      %327 = vmatprep.subr.mxu0 0.0
      %328 = vmatpush1.msra.mxu0 0.0
      %329 = vmatprep.subr.mxu0 0.0
      %330 = vmatpush1.msra.mxu0 0.0
      %331 = vmatprep.mubr.f32.mxu0 0.0
      %332 = vmatmul.mubr.f32.gmra.mrb[0].mxu0 %v256
      %v333 = vpop.f32.mrb[0].mxu0
      %v334 = vadd.f32 %v250, %v333
      %v335 = vpop.f32.mrb[0].mxu0
      %336 = vmatprep.mubr.f32.mxu0 0.0
      %337 = vmatmul.mubr.f32.gmra.mrb[0].mxu0 %v259
      %v338 = vpop.f32.mrb[0].mxu0
      %v339 = vadd.f32 %v251, %v338
      %v340 = vpop.f32.mrb[0].mxu0
      %341 = vmatprep.mubr.f32.mxu0 0.0
      %342 = vmatmul.mubr.f32.gmra.mrb[0].mxu0 %v262
      %v343 = vpop.f32.mrb[0].mxu0
      %v344 = vadd.f32 %v252, %v343
      %v345 = vpop.f32.mrb[0].mxu0
      %346 = vmatprep.mubr.f32.mxu0 0.0
      %347 = vmatmul.mubr.f32.gmra.mrb[0].mxu0 %v265
      %v348 = vpop.f32.mrb[0].mxu0
      %v349 = vadd.f32 %v253, %v348
      %v350 = vpop.f32.mrb[0].mxu0
      %351 = vdwg.mxu0
      %vm352 = vcmask 130048
      %353 = vst.msk [vmem:[%s236] sm:$0xff] %vm352, %v334
      %354 = vst.msk [vmem:[%s236 + $0x8] sm:$0xff] %vm352, %v339
      %355 = vst.msk [vmem:[%s236 + $0x10] sm:$0xff] %vm352, %v344
      %356 = vst.msk [vmem:[%s236 + $0x18] sm:$0xff] %vm352, %v349
      %s357 = smul.u32 4, %s18
      %p358 = scmp.lt.s32.totalorder %s19, 1
      %s359 = scalar_select %p358, %s19, 1
      %p360 = scmp.lt.s32.totalorder %s357, 3
      %s361 = scalar_select %p360, %s357, 3
      %s362 = smul.addr %s359, 4
      %s363 = sadd.s32 %s361, %s362
      %s364 = smul.addr %s363, 8
      %s365 = scalar_lea.vmem %s3, %s364
      // Predicated region
      $region33: #{tpu_custom_call.1} parent=31 // pred_check
        %p366 = pneg %p124
      $region34: #{tpu_custom_call.1} parent=31 // pred_check_branch
        %368 = sbr.rel (%p366) target = $region36
      $region35: #{tpu_custom_call.1} parent=31 // pred_region
        %s369 = smul.u32 4, %s18
      $region36: #{tpu_custom_call.1} parent=31 // pred_fallthru
        _
    $region32: #{tpu_custom_call.1} parent=5 // pred_fallthru
      _
    %p370 = scmp.le.s32.totalorder 2, %s9
    // Predicated region
    $region37: #{tpu_custom_call.1} parent=5 // pred_check
      %p371 = pneg %p370
    $region38: #{tpu_custom_call.1} parent=5 // pred_check_branch
      %373 = sbr.rel (%p371) target = $region40
    $region39: #{tpu_custom_call.1} parent=5 // pred_region
      %s374 = ssub.s32 %s9, 2
      // Predicated region
      $region41: #{tpu_custom_call.1} parent=39 // pred_check
        %p375 = pneg %p130
      $region42: #{tpu_custom_call.1} parent=39 // pred_check_branch
        %377 = sbr.rel (%p375) target = $region44
      $region43: #{tpu_custom_call.1} parent=39 // pred_region
        %s378 = smul.u32 4, %s20
        %p379 = scmp.lt.s32.totalorder %s21, 1
        %s380 = scalar_select %p379, %s21, 1
        %p381 = scmp.lt.s32.totalorder %s378, 3
        %s382 = scalar_select %p381, %s378, 3
        %s383 = smul.addr %s380, 4
        %s384 = sadd.s32 %s382, %s383
        %s385 = smul.addr %s384, 8
        %s386 = scalar_lea.vmem %s3, %s385
      $region44: #{tpu_custom_call.1} parent=39 // pred_fallthru
        _
    $region40: #{tpu_custom_call.1} parent=5 // pred_fallthru
      _
  $region6: #{tpu_custom_call.1} parent=0 // loop_footer
    %s13 = sadd.s32 1, %s9
  $region7: #{tpu_custom_call.1} parent=0 // loop_footer_branch
    %8 = sbr.rel target = $region3
  $region8: #{tpu_custom_call.1} parent=0 // loop_exit
    _

</llo_original>
